<compile_context>
chip_gen: v6e
topology: v6e:2x2x1
jax: 0.10.0
libtpu: 0.0.40
codegen_flags: <defaults>
</compile_context>

<pallas_src>
import functools
import math

import jax
import jax.numpy as jnp
from jax import lax
from jax.experimental import pallas as pl
from jax.experimental.pallas import tpu as pltpu

EPS = 1e-6
VMEM_LIMIT = 48 * 1024 * 1024   # comfortably under v7x's 64 MiB physical VMEM per TC


def _pick_tile(dim, target, align):
    """Largest multiple of `align` <= target that divides `dim`; else the full dim."""
    if dim <= target:
        return dim
    t = (target // align) * align
    while t >= align:
        if dim % t == 0:
            return t
        t -= align
    return dim


# ----------------------------- Pallas kernels -----------------------------

def _norm_matmul_kernel(x_ref, g_ref, w_ref, o_ref):
    # fused RMSNorm(x) @ W  (norm in f32, matmul operands bf16, f32 accumulate)
    x = x_ref[...].astype(jnp.float32)
    var = jnp.mean(x * x, axis=-1, keepdims=True)
    xn = (x * lax.rsqrt(var + EPS) * g_ref[...]).astype(jnp.bfloat16)
    o_ref[...] = jnp.dot(xn, w_ref[...], preferred_element_type=jnp.float32)


def _outproj_resid_kernel(o_ref, w_ref, r_ref, attn_ref, h_ref):
    # attention output projection; emits both attn_out and attn_out + residual
    attn = jnp.dot(o_ref[...].astype(jnp.bfloat16), w_ref[...],
                   preferred_element_type=jnp.float32)
    attn_ref[...] = attn
    h_ref[...] = attn + r_ref[...]


def _flash_attn_kernel(q_ref, k_ref, v_ref, o_ref, m_sc, l_sc, acc_sc, *, scale):
    # online-softmax causal attention; grid = (B*H, q_tiles, kv_tiles)
    qi = pl.program_id(1)
    ki = pl.program_id(2)

    @pl.when(ki == 0)
    def _():
        m_sc[...] = jnp.full(m_sc.shape, -1e30, m_sc.dtype)
        l_sc[...] = jnp.zeros(l_sc.shape, l_sc.dtype)
        acc_sc[...] = jnp.zeros(acc_sc.shape, acc_sc.dtype)

    q = q_ref[0].astype(jnp.bfloat16)   # (TQ, Dh)
    k = k_ref[0].astype(jnp.bfloat16)   # (TK, Dh)
    v = v_ref[0].astype(jnp.bfloat16)   # (TK, Dh)

    s = lax.dot_general(q, k, (((1,), (1,)), ((), ())),
                        preferred_element_type=jnp.float32) * scale
    tq, tk = s.shape
    q_pos = qi * tq + lax.broadcasted_iota(jnp.int32, (tq, tk), 0)
    k_pos = ki * tk + lax.broadcasted_iota(jnp.int32, (tq, tk), 1)
    s = jnp.where(k_pos <= q_pos, s, -1e30)

    m_prev = m_sc[...]
    m_new = jnp.maximum(m_prev, jnp.max(s, axis=-1, keepdims=True))
    alpha = jnp.exp(m_prev - m_new)
    p = jnp.exp(s - m_new)
    l_sc[...] = alpha * l_sc[...] + jnp.sum(p, axis=-1, keepdims=True)
    acc_sc[...] = alpha * acc_sc[...] + jnp.dot(
        p.astype(jnp.bfloat16), v, preferred_element_type=jnp.float32)
    m_sc[...] = m_new

    @pl.when(ki == pl.num_programs(2) - 1)
    def _():
        o_ref[0] = (acc_sc[...] * pl.reciprocal(l_sc[...], approx=True)
                    ).astype(o_ref.dtype)


def _mlp_kernel(x_ref, g_ref, wg_ref, wu_ref, wd_ref, o_ref, xn_sc, acc_sc,
                *, apply_norm, add_residual):
    # fused [RMSNorm +] gate/up matmul + SwiGLU + down-proj [+ residual add],
    # tiled over the intermediate (I) dimension with an f32 VMEM accumulator.
    j = pl.program_id(1)

    @pl.when(j == 0)
    def _():
        x = x_ref[...].astype(jnp.float32)
        if apply_norm:
            var = jnp.mean(x * x, axis=-1, keepdims=True)
            xn = x * lax.rsqrt(var + EPS) * g_ref[...]
        else:
            xn = x
        xn_sc[...] = xn.astype(jnp.bfloat16)
        acc_sc[...] = x if add_residual else jnp.zeros(acc_sc.shape, acc_sc.dtype)

    xn = xn_sc[...]
    gate = jnp.dot(xn, wg_ref[...], preferred_element_type=jnp.float32)
    up = jnp.dot(xn, wu_ref[...], preferred_element_type=jnp.float32)
    hidden = (gate * (1.0 / (1.0 + jnp.exp(-gate))) * up).astype(jnp.bfloat16)
    acc_sc[...] += jnp.dot(hidden, wd_ref[...], preferred_element_type=jnp.float32)

    @pl.when(j == pl.num_programs(1) - 1)
    def _():
        o_ref[...] = acc_sc[...].astype(o_ref.dtype)


def _rmsnorm_kernel(x_ref, g_ref, o_ref):
    x = x_ref[...].astype(jnp.float32)
    var = jnp.mean(x * x, axis=-1, keepdims=True)
    o_ref[...] = x * lax.rsqrt(var + EPS) * g_ref[...]


def _add_kernel(a_ref, b_ref, o_ref):
    o_ref[...] = a_ref[...] + b_ref[...]


# ----------------------------- kernel wrappers -----------------------------

def norm_matmul(x2, gamma, w):
    """RMSNorm(x2) @ w. x2:[M,K] float, gamma:[K] f32, w:[K,N] bf16 -> [M,N] f32."""
    M, K = x2.shape
    N = w.shape[-1]
    TM = _pick_tile(M, 256, 8)
    TN = _pick_tile(N, 512, 128)
    return pl.pallas_call(
        _norm_matmul_kernel,
        out_shape=jax.ShapeDtypeStruct((M, N), jnp.float32),
        grid=(M // TM, N // TN),
        in_specs=[pl.BlockSpec((TM, K), lambda i, j: (i, 0)),
                  pl.BlockSpec((1, K), lambda i, j: (0, 0)),
                  pl.BlockSpec((K, TN), lambda i, j: (0, j))],
        out_specs=pl.BlockSpec((TM, TN), lambda i, j: (i, j)),
        compiler_params=pltpu.CompilerParams(
            dimension_semantics=("parallel", "parallel"),
            vmem_limit_bytes=VMEM_LIMIT),
    )(x2, gamma.reshape(1, K), w)


def outproj_residual(o2, w_o, resid2):
    """(attn_out, attn_out + resid) with attn_out = o2 @ w_o."""
    M, K = o2.shape
    N = w_o.shape[-1]
    TM = _pick_tile(M, 256, 8)
    TN = _pick_tile(N, 512, 128)
    return pl.pallas_call(
        _outproj_resid_kernel,
        out_shape=(jax.ShapeDtypeStruct((M, N), jnp.float32),
                   jax.ShapeDtypeStruct((M, N), jnp.float32)),
        grid=(M // TM, N // TN),
        in_specs=[pl.BlockSpec((TM, K), lambda i, j: (i, 0)),
                  pl.BlockSpec((K, TN), lambda i, j: (0, j)),
                  pl.BlockSpec((TM, TN), lambda i, j: (i, j))],
        out_specs=(pl.BlockSpec((TM, TN), lambda i, j: (i, j)),
                   pl.BlockSpec((TM, TN), lambda i, j: (i, j))),
        compiler_params=pltpu.CompilerParams(
            dimension_semantics=("parallel", "parallel"),
            vmem_limit_bytes=VMEM_LIMIT),
    )(o2, w_o, resid2)


def flash_attention(q, k, v):
    """Causal flash attention. q,k,v: [B*H, S, Dh] (bf16) -> [B*H, S, Dh] f32."""
    BH, S, Dh = q.shape
    TQ = _pick_tile(S, 128, 8)
    TK = _pick_tile(S, 128, 8)
    kernel = functools.partial(_flash_attn_kernel, scale=1.0 / math.sqrt(Dh))
    return pl.pallas_call(
        kernel,
        out_shape=jax.ShapeDtypeStruct((BH, S, Dh), jnp.float32),
        grid=(BH, S // TQ, S // TK),
        in_specs=[pl.BlockSpec((1, TQ, Dh), lambda b, qi, ki: (b, qi, 0)),
                  pl.BlockSpec((1, TK, Dh), lambda b, qi, ki: (b, ki, 0)),
                  pl.BlockSpec((1, TK, Dh), lambda b, qi, ki: (b, ki, 0))],
        out_specs=pl.BlockSpec((1, TQ, Dh), lambda b, qi, ki: (b, qi, 0)),
        scratch_shapes=[pltpu.VMEM((TQ, 1), jnp.float32),
                        pltpu.VMEM((TQ, 1), jnp.float32),
                        pltpu.VMEM((TQ, Dh), jnp.float32)],
        compiler_params=pltpu.CompilerParams(
            dimension_semantics=("parallel", "parallel", "arbitrary"),
            vmem_limit_bytes=VMEM_LIMIT),
    )(q, k, v)


def fused_mlp(x2, gamma, w_gate, w_up, w_down, *, apply_norm, add_residual):
    """[RMSNorm +] SwiGLU MLP [+ residual]. x2:[M,D]; weights bf16 [D,I]/[I,D]."""
    M, D = x2.shape
    I = w_gate.shape[-1]
    TM = _pick_tile(M, 256, 8)
    TI = _pick_tile(I, 512, 128)
    kernel = functools.partial(_mlp_kernel, apply_norm=apply_norm,
                               add_residual=add_residual)
    return pl.pallas_call(
        kernel,
        out_shape=jax.ShapeDtypeStruct((M, D), jnp.float32),
        grid=(M // TM, I // TI),
        in_specs=[pl.BlockSpec((TM, D), lambda i, j: (i, 0)),
                  pl.BlockSpec((1, D), lambda i, j: (0, 0)),
                  pl.BlockSpec((D, TI), lambda i, j: (0, j)),
                  pl.BlockSpec((D, TI), lambda i, j: (0, j)),
                  pl.BlockSpec((TI, D), lambda i, j: (j, 0))],
        out_specs=pl.BlockSpec((TM, D), lambda i, j: (i, 0)),
        scratch_shapes=[pltpu.VMEM((TM, D), jnp.bfloat16),
                        pltpu.VMEM((TM, D), jnp.float32)],
        compiler_params=pltpu.CompilerParams(
            dimension_semantics=("parallel", "arbitrary"),
            vmem_limit_bytes=VMEM_LIMIT),
    )(x2, gamma.reshape(1, D), w_gate, w_up, w_down)


def rmsnorm(x, gamma):
    lead, D = x.shape[:-1], x.shape[-1]
    x2 = x.reshape(-1, D)
    M = x2.shape[0]
    TM = _pick_tile(M, 1024, 8)
    out = pl.pallas_call(
        _rmsnorm_kernel,
        out_shape=jax.ShapeDtypeStruct((M, D), jnp.float32),
        grid=(M // TM,),
        in_specs=[pl.BlockSpec((TM, D), lambda i: (i, 0)),
                  pl.BlockSpec((1, D), lambda i: (0, 0))],
        out_specs=pl.BlockSpec((TM, D), lambda i: (i, 0)),
        compiler_params=pltpu.CompilerParams(
            dimension_semantics=("parallel",),
            vmem_limit_bytes=VMEM_LIMIT),
    )(x2, gamma.reshape(1, D))
    return out.reshape(*lead, D)


def elementwise_add(a, b):
    shape = a.shape
    D = shape[-1]
    a2 = a.reshape(-1, D)
    b2 = jnp.broadcast_to(b, shape).astype(a.dtype).reshape(-1, D)
    M = a2.shape[0]
    TM = _pick_tile(M, 1024, 8)
    out = pl.pallas_call(
        _add_kernel,
        out_shape=jax.ShapeDtypeStruct((M, D), a.dtype),
        grid=(M // TM,),
        in_specs=[pl.BlockSpec((TM, D), lambda i: (i, 0)),
                  pl.BlockSpec((TM, D), lambda i: (i, 0))],
        out_specs=pl.BlockSpec((TM, D), lambda i: (i, 0)),
        compiler_params=pltpu.CompilerParams(
            dimension_semantics=("parallel",),
            vmem_limit_bytes=VMEM_LIMIT),
    )(a2, b2)
    return out.reshape(shape)


# ----------------------------- decoder block -----------------------------

class DecoderBlock:
    """LLaMA-style decoder block built from the fused Pallas kernels above."""

    def __init__(self, params, num_heads):
        self.p = params
        self.num_heads = num_heads
        # plays the role of AttnWrapper.activations (attention output, pre-residual)
        self.self_attn_activations = None

    def post_attention_layernorm(self, x):
        return rmsnorm(x, self.p['ln2_g'])

    def mlp(self, x):
        # mlp(x) with NO norm (API parity with the torch block's mlp submodule)
        B, S, D = x.shape
        out = fused_mlp(x.reshape(B * S, D), self.p['ln2_g'],
                        self.p['w_gate'], self.p['w_up'], self.p['w_down'],
                        apply_norm=False, add_residual=False)
        return out.reshape(B, S, D)

    def norm_mlp(self, x, add_residual):
        # fused post_attention_layernorm + mlp (+ residual)
        B, S, D = x.shape
        out = fused_mlp(x.reshape(B * S, D), self.p['ln2_g'],
                        self.p['w_gate'], self.p['w_up'], self.p['w_down'],
                        apply_norm=True, add_residual=add_residual)
        return out.reshape(B, S, D)

    def __call__(self, hidden_states):
        p = self.p
        B, S, D = hidden_states.shape
        H = self.num_heads
        Dh = D // H
        x2 = hidden_states.reshape(B * S, D)

        # fused input RMSNorm + QKV projection (single matmul vs. concatenated [D, 3D])
        qkv = norm_matmul(x2, p['ln1_g'], p['w_qkv'])                  # [B*S, 3D] f32
        qkv = qkv.astype(jnp.bfloat16).reshape(B, S, 3, H, Dh)
        # TODO(synk): head split/transpose stays in XLA (head_dim=8 < 128-lane tile at
        # demo size); fold into the QKV kernel output layout for large Dh. RoPE omitted.
        q = qkv[:, :, 0].transpose(0, 2, 1, 3).reshape(B * H, S, Dh)
        k = qkv[:, :, 1].transpose(0, 2, 1, 3).reshape(B * H, S, Dh)
        v = qkv[:, :, 2].transpose(0, 2, 1, 3).reshape(B * H, S, Dh)

        o = flash_attention(q, k, v)                                   # [B*H, S, Dh] f32
        o2 = o.reshape(B, H, S, Dh).transpose(0, 2, 1, 3).reshape(B * S, D)

        # fused output projection + residual add (also emits pre-residual attn output)
        attn2, h2 = outproj_residual(o2, p['wo'], x2)
        self.self_attn_activations = attn2.reshape(B, S, D)            # AttnWrapper behaviour

        # fused post_attention_layernorm + SwiGLU MLP + residual add
        out = self.norm_mlp(h2.reshape(B, S, D), add_residual=True)
        return (out,)


# ----------------------------- BlockOutputWrapper -----------------------------

class BlockOutputWrapper:
    def __init__(self, block, unembed_w, final_norm_g):
        self.block = block
        self.unembed_w = unembed_w            # [D, V] bf16 (pre-transposed nn.Linear weight)
        self.final_norm_g = final_norm_g      # RMSNorm weight of `norm`
        self.post_attention_layernorm = block.post_attention_layernorm
        self.attn_out_unembedded = None
        self.intermediate_resid_unembedded = None
        self.mlp_out_unembedded = None
        self.block_output_unembedded = None
        self.activations = None
        self.add_activations = None
        self.save_internal_decodings = False
        self.only_add_to_first_token = False
        self.is_first_token = True

    def should_perturb_activations(self):
        if self.add_activations is None:
            return False
        if self.only_add_to_first_token:
            return self.is_first_token
        return True

    def __call__(self, *args, **kwargs):
        output = self.block(*args, **kwargs)
        self.activations = output[0]
        if self.should_perturb_activations():
            output = (elementwise_add(output[0], self.add_activations),) + output[1:]
            self.is_first_token = False
        if not self.save_internal_decodings:
            return output

        B, S, D = output[0].shape
        attn_out = self.block.self_attn_activations               # pre-residual attn output
        intermediate = elementwise_add(attn_out, args[0])          # torch `attn_output += args[0]`
        self.block.self_attn_activations = intermediate            # mirror in-place mutation
        # mlp(post_attention_layernorm(intermediate)) fused into one kernel
        mlp_out = self.block.norm_mlp(intermediate, add_residual=False)

        # Batch the four norm+unembed decodings into ONE fused kernel so the [D, V]
        # unembed weight streams from HBM once instead of four times.
        stacked = jnp.stack([output[0], attn_out, intermediate, mlp_out], axis=0)
        V = self.unembed_w.shape[-1]
        decoded = norm_matmul(stacked.reshape(4 * B * S, D),
                              self.final_norm_g, self.unembed_w).reshape(4, B, S, V)
        self.block_output_unembedded = decoded[0]
        self.attn_out_unembedded = decoded[1]
        self.intermediate_resid_unembedded = decoded[2]
        self.mlp_out_unembedded = decoded[3]
        return output

    def add(self, activations):
        self.add_activations = activations

    def reset(self):
        self.add_activations = None
        self.activations = None
        self.block.self_attn_activations = None
        self.is_first_token = True


# ----------------------------- setup / main -----------------------------

def init_params(key, D, I):
    ks = jax.random.split(key, 7)
    s = 0.02
    wq = jax.random.normal(ks[0], (D, D), jnp.float32) * s
    wk = jax.random.normal(ks[1], (D, D), jnp.float32) * s
    wv = jax.random.normal(ks[2], (D, D), jnp.float32) * s
    return dict(
        w_qkv=jnp.concatenate([wq, wk, wv], axis=1).astype(jnp.bfloat16),   # [D, 3D]
        wo=(jax.random.normal(ks[3], (D, D), jnp.float32) * s).astype(jnp.bfloat16),
        w_gate=(jax.random.normal(ks[4], (D, I), jnp.float32) * s).astype(jnp.bfloat16),
        w_up=(jax.random.normal(ks[5], (D, I), jnp.float32) * s).astype(jnp.bfloat16),
        w_down=(jax.random.normal(ks[6], (I, D), jnp.float32) * s).astype(jnp.bfloat16),
        ln1_g=jnp.ones((D,), jnp.float32),
        ln2_g=jnp.ones((D,), jnp.float32),
    )


if __name__ == "__main__":
    B, S, D, H, I, V = 2, 8, 32, 4, 64, 64

    key = jax.random.PRNGKey(0)
    k_params, k_un, k_x, k_add = jax.random.split(key, 4)

    params = init_params(k_params, D, I)
    unembed_w = (jax.random.normal(k_un, (D, V), jnp.float32) * 0.02).astype(jnp.bfloat16)
    final_norm_g = jnp.ones((D,), jnp.float32)

    block = DecoderBlock(params, num_heads=H)
    wrapper = BlockOutputWrapper(block, unembed_w, final_norm_g)
    wrapper.save_internal_decodings = True
    wrapper.add(jax.random.normal(k_add, (D,), jnp.float32) * 0.1)

    x = jax.random.normal(k_x, (B, S, D), jnp.float32)
    output = wrapper(x)

    jax.block_until_ready(output[0])
    for t in (wrapper.block_output_unembedded, wrapper.attn_out_unembedded,
              wrapper.intermediate_resid_unembedded, wrapper.mlp_out_unembedded):
        jax.block_until_ready(t)

    assert output[0].shape == (B, S, D)
    assert wrapper.activations.shape == (B, S, D)
    assert wrapper.block_output_unembedded.shape == (B, S, V)
    assert wrapper.attn_out_unembedded.shape == (B, S, V)
    assert wrapper.intermediate_resid_unembedded.shape == (B, S, V)
    assert wrapper.mlp_out_unembedded.shape == (B, S, V)
    assert bool(jnp.all(jnp.isfinite(output[0])))
    assert bool(jnp.all(jnp.isfinite(wrapper.block_output_unembedded)))
    assert bool(jnp.all(jnp.isfinite(wrapper.mlp_out_unembedded)))

    print("KERNEL_OK")
</pallas_src>

<mosaic_0001>
module attributes {stable_mosaic.version = 11 : i64} {
  func.func @_norm_matmul_kernel(%arg0: i32, %arg1: i32, %arg2: memref<16x32xf32, #tpu.memory_space<vmem>>, %arg3: memref<1x32xf32, #tpu.memory_space<vmem>>, %arg4: memref<32x96xbf16, #tpu.memory_space<vmem>>, %arg5: memref<16x96xf32, #tpu.memory_space<vmem>>) attributes {dimension_semantics = [#tpu.dimension_semantics<parallel>, #tpu.dimension_semantics<parallel>], iteration_bounds = array<i64: 1, 1>, scalar_prefetch = 0 : i64, scratch_operands = 0 : i64, tpu.core_type = #tpu.core_type<tc>, window_params = [{transform_indices = @transform_0, window_bounds = array<i64: 16, 32>}, {pipeline_mode = #tpu.pipeline_mode<synchronous>, transform_indices = @transform_1, window_bounds = array<i64: 1, 32>}, {transform_indices = @transform_2, window_bounds = array<i64: 32, 96>}, {transform_indices = @transform_3, window_bounds = array<i64: 16, 96>}]} {
    %c0 = arith.constant 0 : index
    %c0_0 = arith.constant 0 : index
    %0 = vector.load %arg2[%c0, %c0_0] : memref<16x32xf32, #tpu.memory_space<vmem>>, vector<16x32xf32>
    %1 = arith.mulf %0, %0 : vector<16x32xf32>
    %cst = arith.constant dense<0.000000e+00> : vector<16xf32>
    %2 = vector.multi_reduction <add>, %1, %cst [1] : vector<16x32xf32> to vector<16xf32>
    %3 = vector.shape_cast %2 : vector<16xf32> to vector<16x1xf32>
    %cst_1 = arith.constant 3.200000e+01 : f32
    %4 = vector.broadcast %cst_1 : f32 to vector<16x1xf32>
    %5 = arith.divf %3, %4 : vector<16x1xf32>
    %cst_2 = arith.constant 9.99999997E-7 : f32
    %6 = vector.broadcast %cst_2 : f32 to vector<16x1xf32>
    %7 = arith.addf %5, %6 : vector<16x1xf32>
    %8 = math.rsqrt %7 : vector<16x1xf32>
    %9 = vector.broadcast %8 : vector<16x1xf32> to vector<16x32xf32>
    %10 = arith.mulf %0, %9 : vector<16x32xf32>
    %c0_3 = arith.constant 0 : index
    %c0_4 = arith.constant 0 : index
    %11 = vector.load %arg3[%c0_3, %c0_4] : memref<1x32xf32, #tpu.memory_space<vmem>>, vector<1x32xf32>
    %12 = vector.broadcast %11 : vector<1x32xf32> to vector<16x32xf32>
    %13 = arith.mulf %10, %12 : vector<16x32xf32>
    %14 = arith.truncf %13 : vector<16x32xf32> to vector<16x32xbf16>
    %c0_5 = arith.constant 0 : index
    %c0_6 = arith.constant 0 : index
    %15 = vector.load %arg4[%c0_5, %c0_6] : memref<32x96xbf16, #tpu.memory_space<vmem>>, vector<32x96xbf16>
    %cst_7 = arith.constant dense<0.000000e+00> : vector<16x96xf32>
    %16 = tpu.matmul %14, %15, %cst_7 {dimension_numbers = #tpu.dot_dimension_numbers<[1], [0], [0], [1], [0, 0, 1, 1], [], []>} : vector<16x32xbf16>, vector<32x96xbf16>, vector<16x96xf32> -> vector<16x96xf32>
    %c0_8 = arith.constant 0 : index
    %c0_9 = arith.constant 0 : index
    %17 = vector.load %arg5[%c0_8, %c0_9] : memref<16x96xf32, #tpu.memory_space<vmem>>, vector<16x96xf32>
    tpu.vector_store %arg5[%c0_8, %c0_9], %16 {strides = array<i32>} : memref<16x96xf32, #tpu.memory_space<vmem>>, vector<16x96xf32>,
    return
  }
  func.func @transform_0(%arg0: i32, %arg1: i32) -> (i32, i32) {
    %c0_i32 = arith.constant 0 : i32
    %c0_i32_0 = arith.constant 0 : i32
    return %arg0, %c0_i32 : i32, i32
  }
  func.func @transform_1(%arg0: i32, %arg1: i32) -> (i32, i32) {
    %c0_i32 = arith.constant 0 : i32
    %c0_i32_0 = arith.constant 0 : i32
    %c0_i32_1 = arith.constant 0 : i32
    return %c0_i32, %c0_i32_0 : i32, i32
  }
  func.func @transform_2(%arg0: i32, %arg1: i32) -> (i32, i32) {
    %c0_i32 = arith.constant 0 : i32
    %c0_i32_0 = arith.constant 0 : i32
    return %c0_i32, %arg1 : i32, i32
  }
  func.func @transform_3(%arg0: i32, %arg1: i32) -> (i32, i32) {
    %c0_i32 = arith.constant 0 : i32
    return %arg0, %arg1 : i32, i32
  }
}

</mosaic_0001>

<llo_original>
// kernel: tpu_custom_call.1
$region0: #{tpu_custom_call.1}
  #allocation0 [shape = 'u32[]', space=smem, size = 0x4, offset = 0x4, fixed_abs, tag = 'smem constant byte address 0x4 - core index']
  #allocation1 [shape = 'u32[144,128]{1,0:T(1,128)}', space=vmem, size = 0x12000, scoped, tag = 'internal scratch']
  %s0 = inlined_call_operand.hbm [shape: f32[16,32], index: 0, kind: input, shape index: {}]
  %s1 = inlined_call_operand.vmem [shape: f32[1,32], index: 1, kind: input, shape index: {}]
  %s2 = inlined_call_operand.hbm [shape: bf16[32,96], index: 2, kind: input, shape index: {}]
  %s3 = inlined_call_operand.hbm [shape: f32[16,96], index: 3, kind: output, shape index: {}]
  %s4 = sld [smem:[#allocation0]]
  $region30: #{tpu_custom_call.1} parent=0
    _
  %s6 = ssub.s32 1, %s4
  %s7 = scalar_select 0, %s6, %s4
  $region1: #{tpu_custom_call.1} parent=0
    #allocation2 [shape = 'u8[8192]{0}', space=vmem, size = 0x2000, scoped, tag = 'input window, operand 0, single buffered']
    #allocation3 [shape = 's32[1]{0}', space=sflag, size = 0x4, scoped, tag = 'scoped memory for tpu_custom_call.1']
    #allocation4 [shape = 's32[1]{0}', space=sflag, size = 0x4, scoped, tag = 'scoped memory for tpu_custom_call.1']
    #allocation5 [shape = 'u8[8192]{0}', space=vmem, size = 0x2000, scoped, tag = 'input window, operand 2, single buffered']
    #allocation6 [shape = 's32[1]{0}', space=sflag, size = 0x4, scoped, tag = 'scoped memory for tpu_custom_call.1']
    #allocation7 [shape = 'u8[8192]{0}', space=vmem, size = 0x2000, scoped, tag = 'output window, operand 0, single buffered']
    %8 = vsyncpa [#allocation3], 0
    %9 = vsyncpa [#allocation6], 0
    %10 = vsyncpa [#allocation4], 0
    // Predicated region
    $region2: #{tpu_custom_call.1} parent=1 // pred_check
      _
    $region3: #{tpu_custom_call.1} parent=1 // pred_check_branch
      %12 = sbr.rel (0) target = $region5
    $region4: #{tpu_custom_call.1} parent=1 // pred_region
      %s14 = ssub.s32 256, 256
      %15 = vsyncadd [#allocation3], %s14
      %s16 = sshll.u32 [#allocation2], 4
      %s17 = int_to_ptr.vmem [resolvable:$true] %s16
      %22 = dma.hbm_to_vmem [thread:$0]  %s0, 256, %s17, [#allocation3], 128, 128, 8
    $region5: #{tpu_custom_call.1} parent=1 // pred_fallthru
      _
    // Predicated region
    $region6: #{tpu_custom_call.1} parent=1 // pred_check
      _
    $region7: #{tpu_custom_call.1} parent=1 // pred_check_branch
      %24 = sbr.rel (0) target = $region9
    $region8: #{tpu_custom_call.1} parent=1 // pred_region
      _
    $region9: #{tpu_custom_call.1} parent=1 // pred_fallthru
      _
    // Predicated region
    $region10: #{tpu_custom_call.1} parent=1 // pred_check
      _
    $region11: #{tpu_custom_call.1} parent=1 // pred_check_branch
      %26 = sbr.rel (0) target = $region13
    $region12: #{tpu_custom_call.1} parent=1 // pred_region
      %s28 = ssub.s32 256, 256
      %29 = vsyncadd [#allocation6], %s28
      %s30 = sshll.u32 [#allocation5], 4
      %s31 = int_to_ptr.vmem [resolvable:$true] %s30
      %36 = dma.hbm_to_vmem [thread:$0]  %s2, 256, %s31, [#allocation6], 64, 64, 4
    $region13: #{tpu_custom_call.1} parent=1 // pred_fallthru
      _
    // Predicated region
    $region14: #{tpu_custom_call.1} parent=1 // pred_check
      _
    $region15: #{tpu_custom_call.1} parent=1 // pred_check_branch
      %38 = sbr.rel (0) target = $region17
    $region16: #{tpu_custom_call.1} parent=1 // pred_region
      %39 = dma.done [#allocation3], 256
    $region17: #{tpu_custom_call.1} parent=1 // pred_fallthru
      _
    // Predicated region
    $region18: #{tpu_custom_call.1} parent=1 // pred_check
      _
    $region19: #{tpu_custom_call.1} parent=1 // pred_check_branch
      %41 = sbr.rel (0) target = $region21
    $region20: #{tpu_custom_call.1} parent=1 // pred_region
      %42 = dma.done [#allocation6], 256
    $region21: #{tpu_custom_call.1} parent=1 // pred_fallthru
      _
    %v44 = vld [vmem:[#allocation2] sm:$0xff]
    %v45 = vld [vmem:[#allocation2 + $0x8] sm:$0xff]
    %v46 = vmul.f32 %v44, %v44
    %v47 = vmul.f32 %v45, %v45
    %vm48 = vcmask 261120
    %v49 = vsel %vm48, %v46, 0.0
    %50 = vadd.xlane.f32.xlu0 %v49
    %v51 = vpop.xlane.xlu0 %50
    %v52 = vsel %vm48, %v47, 0.0
    %53 = vadd.xlane.f32.xlu0 %v52
    %v54 = vpop.xlane.xlu0 %53
    %v55 = vrcp.pop 32.0
    %v56 = vmul.f32 %v51, %v55
    %v57 = vmul.f32 %v54, %v55
    %v58 = vadd.f32 %v56, 1e-06
    %v59 = vadd.f32 %v57, 1e-06
    %v60 = vrsqrt.pop %v58
    %v61 = vrsqrt.pop %v59
    %v62 = vmul.f32 %v44, %v60
    %v63 = vmul.f32 %v45, %v61
    %v64 = vld [vmem:[%s1] sm:$0x1]
    %v66 = vlaneseq
    %v67 = vshrl.u32 %v66, 7
    %v68 = vsub.s32 0, %v67
    %v69 = vrot.slane %v64, %v68
    %v71 = vmul.f32 %v62, %v69
    %v72 = vmul.f32 %v63, %v69
    %v73 = vpack.c.bf16 %v72, %v71
    %v74 = vld [vmem:[#allocation5] sm:$0xf]
    %v75 = vld [vmem:[#allocation5 + $0x4] sm:$0xf]
    %v76 = vld [vmem:[#allocation5 + $0x8] sm:$0xf]
    %v77 = vld [vmem:[#allocation5 + $0xc] sm:$0xf]
    %v82 = vunpack.c.l.b16 %v74
    %v83 = vunpack.c.l.b16 %v75
    %v84 = vunpack.c.l.b16 %v76
    %v85 = vunpack.c.l.b16 %v77
    %v86 = vpack.c.b16 %v83, %v82
    %v87 = vpack.c.b16 %v85, %v84
    %v91 = vsel %vm48, %v73, 0
    %93 = vmatprep.subr.bf16.mxu0 0
    %94 = vmatpush1.bf16.msra.mxu0 0
    %95 = vmatprep.subr.bf16.mxu0 0
    %96 = vmatpush1.bf16.msra.mxu0 0
    %97 = vmatprep.subr.bf16.mxu0 0
    %98 = vmatpush1.bf16.msra.mxu0 0
    %99 = vmatprep.subr.bf16.mxu0 0
    %100 = vmatpush1.bf16.msra.mxu0 0
    %101 = vmatprep.subr.bf16.mxu0 0
    %102 = vmatpush1.bf16.msra.mxu0 0
    %103 = vmatprep.subr.bf16.mxu0 0
    %104 = vmatpush1.bf16.msra.mxu0 0
    %105 = vmatprep.subr.bf16.mxu0 0
    %106 = vmatpush1.bf16.msra.mxu0 %v87
    %107 = vmatprep.subr.bf16.mxu0 0
    %108 = vmatpush1.bf16.msra.mxu0 %v86
    %109 = vmatprep.subr.bf16.mxu0 0
    %110 = vmatpush2.bf16.msra.mxu0 0
    %111 = vmatprep.subr.bf16.mxu0 0
    %112 = vmatpush2.bf16.msra.mxu0 0
    %113 = vmatprep.subr.bf16.mxu0 0
    %114 = vmatpush2.bf16.msra.mxu0 0
    %115 = vmatprep.subr.bf16.mxu0 0
    %116 = vmatpush2.bf16.msra.mxu0 0
    %117 = vmatprep.subr.bf16.mxu0 0
    %118 = vmatpush2.bf16.msra.mxu0 0
    %119 = vmatprep.subr.bf16.mxu0 0
    %120 = vmatpush2.bf16.msra.mxu0 0
    %121 = vmatprep.subr.bf16.mxu0 0
    %122 = vmatpush2.bf16.msra.mxu0 0
    %123 = vmatprep.subr.bf16.mxu0 0
    %124 = vmatpush2.bf16.msra.mxu0 0
    %125 = vmatprep.mubr.bf16.mxu0 0
    %126 = vmatmul.mubr.bf16.gmra.mxu0 %v91
    %v127 = vpop.f32.mrf.mxu0
    %v128 = vadd.f32 0.0, %v127
    %v129 = vpop.f32.mrf.mxu0
    %v130 = vpop.f32.mrf.mxu0
    %v131 = vadd.f32 0.0, %v130
    %v132 = vpop.f32.mrf.mxu0
    %133 = vdwg.mxu0
    %vm134 = vcmask 785408
    %135 = vst.msk [vmem:[#allocation7] sm:$0xff] %vm134, %v128
    %136 = vst.msk [vmem:[#allocation7 + $0x8] sm:$0xff] %vm134, %v131
    // Predicated region
    $region22: #{tpu_custom_call.1} parent=1 // pred_check
      _
    $region23: #{tpu_custom_call.1} parent=1 // pred_check_branch
      %138 = sbr.rel (0) target = $region25
    $region24: #{tpu_custom_call.1} parent=1 // pred_region
      %s140 = ssub.s32 256, 256
      %141 = vsyncadd [#allocation4], %s140
      %s142 = sshll.u32 [#allocation7], 4
      %s143 = int_to_ptr.vmem [resolvable:$true] %s142
      %148 = dma.vmem_to_hbm [thread:$0]  %s143, 256, %s3, [#allocation4], 128, 128, 8
    $region25: #{tpu_custom_call.1} parent=1 // pred_fallthru
      _
    // Predicated region
    $region26: #{tpu_custom_call.1} parent=1 // pred_check
      _
    $region27: #{tpu_custom_call.1} parent=1 // pred_check_branch
      %150 = sbr.rel (0) target = $region29
    $region28: #{tpu_custom_call.1} parent=1 // pred_region
      %151 = dma.done [#allocation4], 256
    $region29: #{tpu_custom_call.1} parent=1 // pred_fallthru
      _
    %152 = vsyncpa [#allocation3], 1
    %153 = vsyncpa [#allocation6], 1
    %154 = vsyncpa [#allocation4], 1

</llo_original>
